<compile_context>
chip_gen: v7x
topology: tpu7x:2x2x1
jax: 0.10.0
libtpu: 0.0.40
codegen_flags: <defaults>
</compile_context>

<pallas_src>
import functools
import math

import jax
import jax.numpy as jnp
from jax.experimental import pallas as pl
from jax.experimental.pallas import tpu as pltpu


def _round_up(x, m):
    return ((x + m - 1) // m) * m


def _vmem_budget_bytes():
    """~85% of physical per-core VMEM (headroom for compiler scratch/semaphores)."""
    try:
        cap = pltpu.get_tpu_info().vmem_capacity_bytes
    except Exception:
        cap = 64 << 20  # conservative fallback (v7x-sized)
    return int(cap * 0.85)


def _ffn_kernel(x_ref, w1_ref, b1_ref, w2_ref, b2_ref, o_ref, *, approximate_gelu):
    # x_ref : (tm, dim_p)   w1_ref: (dim_p, th)   b1_ref: (1, th)
    # w2_ref: (th, out_p)   b2_ref: (1, out_p)    o_ref : (tm, out_p) f32, resident across k
    k = pl.program_id(1)

    @pl.when(k == 0)
    def _():
        # Seed the resident f32 output block with the second-layer bias.
        o_ref[...] = jnp.broadcast_to(b2_ref[...], o_ref.shape).astype(o_ref.dtype)

    x = x_ref[...].astype(w1_ref.dtype)  # bf16 (or f32) MXU inputs, f32 accumulation
    h = jnp.dot(x, w1_ref[...], preferred_element_type=jnp.float32) + b1_ref[...]
    # tanh-approx GELU -> tanh goes to the EUP slot; approximate=False gives exact erf.
    h = jax.nn.gelu(h, approximate=approximate_gelu)
    o_ref[...] += jnp.dot(h.astype(w2_ref.dtype), w2_ref[...],
                          preferred_element_type=jnp.float32)


@functools.partial(
    jax.jit,
    static_argnames=("out_dim", "tm", "th", "matmul_dtype", "approximate_gelu",
                     "weight_buffers"),
)
def feed_forward(x, w1, b1, w2, b2, *, out_dim=None, tm=512, th=512,
                 matmul_dtype=jnp.bfloat16, approximate_gelu=True, weight_buffers=2):
    """x: [..., dim] -> [..., out_dim], fused MLP on TPU.

    Weights are [in_features, out_features] (transposed vs PyTorch's [out, in]).
    Pass pre-padded params from pad_ffn_params() (plus the true out_dim=) to keep
    all padding/casting out of the hot path.
    """
    orig_shape = x.shape
    dim = orig_shape[-1]
    dim_w, hidden_w = w1.shape
    out_w = w2.shape[1]
    if out_dim is None:
        out_dim = out_w

    x2d = x.reshape(-1, dim)
    n = x2d.shape[0]

    # Lane-dense padding targets (no masked vst.msk on the minor dims).
    dim_p = _round_up(dim_w, 128)
    hidden_p = _round_up(hidden_w, 128)
    out_p = _round_up(out_w, 128)

    # ---- row tile (tm): large for arithmetic intensity, adaptive for ragged N ----
    n8 = _round_up(n, 8)
    tm_eff = min(tm, n8)
    while tm_eff > 64 and (_round_up(n8, tm_eff) - n8) * 8 > n8:  # waste > ~12.5%
        tm_eff //= 2
    # Give the second TensorCore (v7x megacore) work for small batches.
    if _round_up(n8, tm_eff) // tm_eff < 2 and n8 > 8 and n8 % 16 == 0:
        tm_eff = n8 // 2

    # ---- hidden tile (th): a 128-multiple that divides hidden_p (no extra pad) ----
    th_cands = [c for c in range(128, min(th, hidden_p) + 1, 128) if hidden_p % c == 0]
    if not th_cands:
        th_cands = [128]
    ti = len(th_cands) - 1

    # ---- fit the double-buffered working set under the per-chip VMEM budget ----
    budget = _vmem_budget_bytes()
    x_isz = x.dtype.itemsize
    w_isz = jnp.dtype(matmul_dtype).itemsize
    nbuf = max(2, weight_buffers)

    def footprint(tm_e, th_e):
        return (tm_e * dim_p * x_isz * 2            # x row tile
                + dim_p * th_e * w_isz * nbuf       # W1 column tile
                + th_e * 4 * nbuf                   # b1 tile (f32)
                + th_e * out_p * w_isz * nbuf       # W2 row tile
                + out_p * 4 * 2                     # b2 (f32)
                + tm_e * out_p * 4 * 2)             # resident f32 output block

    # Shrink th first (keeps tm / arithmetic intensity; th stays a 256-multiple when
    # possible for the 256x256 MXU), then shrink tm.
    while (footprint(tm_eff, th_cands[ti]) > 0.9 * budget
           and ti > 0 and th_cands[ti] > 256):
        ti -= 1
    while footprint(tm_eff, th_cands[ti]) > 0.9 * budget and tm_eff > 8:
        tm_eff = max(8, _round_up(tm_eff // 2, 8))
    th_eff = th_cands[ti]

    n_p = _round_up(n8, tm_eff)

    # ---- padding / dtype prep (all no-ops when pad_ffn_params() was used) ----
    w1 = w1.astype(matmul_dtype)
    w2 = w2.astype(matmul_dtype)
    b1 = b1.astype(jnp.float32)
    b2 = b2.astype(jnp.float32)
    # Zero padding is exact: gelu(0)=0 and matching zero W2 rows contribute nothing.
    if (n_p, dim_p) != (n, dim):
        x2d = jnp.pad(x2d, ((0, n_p - n), (0, dim_p - dim)))
    if (dim_p, hidden_p) != (dim_w, hidden_w):
        w1 = jnp.pad(w1, ((0, dim_p - dim_w), (0, hidden_p - hidden_w)))
    if hidden_p != hidden_w:
        b1 = jnp.pad(b1, ((0, hidden_p - hidden_w),))
    if (hidden_p, out_p) != (hidden_w, out_w):
        w2 = jnp.pad(w2, ((0, hidden_p - hidden_w), (0, out_p - out_w)))
    if out_p != out_w:
        b2 = jnp.pad(b2, ((0, out_p - out_w),))

    b1_2d = b1.reshape(1, hidden_p)
    b2_2d = b2.reshape(1, out_p)

    grid = (n_p // tm_eff, hidden_p // th_eff)

    w_kwargs = {}
    if weight_buffers > 2:  # deeper pipelining on the weight streams (v5e knob)
        w_kwargs["pipeline_mode"] = pl.Buffered(weight_buffers)

    out = pl.pallas_call(
        functools.partial(_ffn_kernel, approximate_gelu=approximate_gelu),
        out_shape=jax.ShapeDtypeStruct((n_p, out_p), jnp.float32),
        grid_spec=pltpu.PrefetchScalarGridSpec(
            num_scalar_prefetch=0,
            grid=grid,
            in_specs=[
                pl.BlockSpec((tm_eff, dim_p), lambda i, k: (i, 0)),
                pl.BlockSpec((dim_p, th_eff), lambda i, k: (0, k), **w_kwargs),
                pl.BlockSpec((1, th_eff), lambda i, k: (0, k)),
                pl.BlockSpec((th_eff, out_p), lambda i, k: (k, 0), **w_kwargs),
                pl.BlockSpec((1, out_p), lambda i, k: (0, 0)),
            ],
            out_specs=pl.BlockSpec((tm_eff, out_p), lambda i, k: (i, 0)),
        ),
        compiler_params=pltpu.CompilerParams(
            dimension_semantics=("parallel", "arbitrary"),
            vmem_limit_bytes=budget,
        ),
    )(x2d, w1, b1_2d, w2, b2_2d)

    out = out[:n, :out_dim]
    if out.dtype != x.dtype:
        out = out.astype(x.dtype)
    return out.reshape(*orig_shape[:-1], out_dim)


def pad_ffn_params(w1, b1, w2, b2, *, matmul_dtype=jnp.bfloat16):
    """One-time 128-alignment padding + dtype conversion, outside the hot path.

    Returns (w1, b1, w2, b2) ready for feed_forward (pass the true out_dim= there,
    since the padded w2 hides it).
    """
    dim, hidden = w1.shape
    out_dim = w2.shape[1]
    dim_p = _round_up(dim, 128)
    hidden_p = _round_up(hidden, 128)
    out_p = _round_up(out_dim, 128)
    w1 = jnp.pad(w1.astype(matmul_dtype), ((0, dim_p - dim), (0, hidden_p - hidden)))
    b1 = jnp.pad(b1.astype(jnp.float32), ((0, hidden_p - hidden),))
    w2 = jnp.pad(w2.astype(matmul_dtype), ((0, hidden_p - hidden), (0, out_p - out_dim)))
    b2 = jnp.pad(b2.astype(jnp.float32), ((0, out_p - out_dim),))
    return w1, b1, w2, b2


def init_feed_forward_params(key, dim, hidden_dim, out_dim=-1, dtype=jnp.float32):
    """Deterministic init mimicking torch.nn.Linear default (U[-1/sqrt(fan_in), +])."""
    if out_dim == -1:
        out_dim = dim
    k1, k2, k3, k4 = jax.random.split(key, 4)
    lim1 = 1.0 / math.sqrt(dim)
    lim2 = 1.0 / math.sqrt(hidden_dim)
    w1 = jax.random.uniform(k1, (dim, hidden_dim), dtype, -lim1, lim1)
    b1 = jax.random.uniform(k2, (hidden_dim,), dtype, -lim1, lim1)
    w2 = jax.random.uniform(k3, (hidden_dim, out_dim), dtype, -lim2, lim2)
    b2 = jax.random.uniform(k4, (out_dim,), dtype, -lim2, lim2)
    return w1, b1, w2, b2


if __name__ == "__main__":
    key = jax.random.PRNGKey(0)
    kx, kp = jax.random.split(key)

    batch, seq, dim, hidden = 2, 8, 32, 64
    out_dim = dim
    x = jax.random.normal(kx, (batch, seq, dim), dtype=jnp.float32)
    w1, b1, w2, b2 = init_feed_forward_params(kp, dim, hidden, out_dim)

    # One-time pre-padding + bf16 conversion outside the hot path.
    pw1, pb1, pw2, pb2 = pad_ffn_params(w1, b1, w2, b2)

    out = feed_forward(x, pw1, pb1, pw2, pb2, out_dim=out_dim)
    jax.block_until_ready(out)
    assert out.shape == (batch, seq, out_dim)

    # Reference mirroring the kernel's numerics (bf16 matmuls, f32 accum, tanh GELU).
    xb = x.reshape(-1, dim).astype(jnp.bfloat16)
    ref_h = jnp.dot(xb, w1.astype(jnp.bfloat16), preferred_element_type=jnp.float32) + b1
    ref_h = jax.nn.gelu(ref_h, approximate=True)
    ref = jnp.dot(ref_h.astype(jnp.bfloat16), w2.astype(jnp.bfloat16),
                  preferred_element_type=jnp.float32) + b2
    ref = ref.reshape(batch, seq, out_dim).astype(x.dtype)
    assert jnp.allclose(out, ref, atol=2e-3, rtol=2e-3)

    # Sanity vs the exact f32 / erf path (PyTorch default), looser tolerance
    # (bf16 matmuls + tanh-GELU approximation).
    ref_h32 = x.reshape(-1, dim) @ w1 + b1
    ref_h32 = 0.5 * ref_h32 * (1.0 + jax.lax.erf(ref_h32 / math.sqrt(2.0)))
    ref32 = (ref_h32 @ w2 + b2).reshape(batch, seq, out_dim)
    assert jnp.allclose(out, ref32, atol=6e-2, rtol=6e-2)

    print("KERNEL_OK")
</pallas_src>

<mosaic_0001>
module attributes {stable_mosaic.version = 11 : i64} {
  func.func @_ffn_kernel(%arg0: i32, %arg1: i32, %arg2: memref<8x128xf32, #tpu.memory_space<vmem>>, %arg3: memref<128x128xbf16, #tpu.memory_space<vmem>>, %arg4: memref<1x128xf32, #tpu.memory_space<vmem>>, %arg5: memref<128x128xbf16, #tpu.memory_space<vmem>>, %arg6: memref<1x128xf32, #tpu.memory_space<vmem>>, %arg7: memref<8x128xf32, #tpu.memory_space<vmem>>) attributes {dimension_semantics = [#tpu.dimension_semantics<parallel>, #tpu.dimension_semantics<arbitrary>], iteration_bounds = array<i64: 2, 1>, scalar_prefetch = 0 : i64, scratch_operands = 0 : i64, tpu.core_type = #tpu.core_type<tc>, window_params = [{transform_indices = @transform_0, window_bounds = array<i64: 8, 128>}, {transform_indices = @transform_1, window_bounds = array<i64: 128, 128>}, {transform_indices = @transform_2, window_bounds = array<i64: 1, 128>}, {transform_indices = @transform_3, window_bounds = array<i64: 128, 128>}, {pipeline_mode = #tpu.pipeline_mode<synchronous>, transform_indices = @transform_4, window_bounds = array<i64: 1, 128>}, {transform_indices = @transform_5, window_bounds = array<i64: 8, 128>}]} {
    %c0_i32 = arith.constant 0 : i32
    %0 = arith.cmpi eq, %arg1, %c0_i32 : i32
    %1 = arith.extui %0 : i1 to i32
    %c0_i32_0 = arith.constant 0 : i32
    %2 = arith.cmpi ne, %1, %c0_i32_0 : i32
    scf.if %2 {
      %c0_17 = arith.constant 0 : index
      %c0_18 = arith.constant 0 : index
      %29 = vector.load %arg6[%c0_17, %c0_18] : memref<1x128xf32, #tpu.memory_space<vmem>>, vector<1x128xf32>
      %30 = vector.shape_cast %29 : vector<1x128xf32> to vector<1x128xf32>
      %31 = vector.broadcast %30 : vector<1x128xf32> to vector<8x128xf32>
      %c0_19 = arith.constant 0 : index
      %c0_20 = arith.constant 0 : index
      %32 = vector.load %arg7[%c0_19, %c0_20] : memref<8x128xf32, #tpu.memory_space<vmem>>, vector<8x128xf32>
      tpu.vector_store %arg7[%c0_19, %c0_20], %31 {strides = array<i32>} : memref<8x128xf32, #tpu.memory_space<vmem>>, vector<8x128xf32>,
    } else {
    }
    %c0 = arith.constant 0 : index
    %c0_1 = arith.constant 0 : index
    %3 = vector.load %arg2[%c0, %c0_1] : memref<8x128xf32, #tpu.memory_space<vmem>>, vector<8x128xf32>
    %4 = arith.truncf %3 : vector<8x128xf32> to vector<8x128xbf16>
    %c0_2 = arith.constant 0 : index
    %c0_3 = arith.constant 0 : index
    %5 = vector.load %arg3[%c0_2, %c0_3] : memref<128x128xbf16, #tpu.memory_space<vmem>>, vector<128x128xbf16>
    %cst = arith.constant dense<0.000000e+00> : vector<8x128xf32>
    %6 = tpu.matmul %4, %5, %cst {dimension_numbers = #tpu.dot_dimension_numbers<[1], [0], [0], [1], [0, 0, 1, 1], [], []>} : vector<8x128xbf16>, vector<128x128xbf16>, vector<8x128xf32> -> vector<8x128xf32>
    %c0_4 = arith.constant 0 : index
    %c0_5 = arith.constant 0 : index
    %7 = vector.load %arg4[%c0_4, %c0_5] : memref<1x128xf32, #tpu.memory_space<vmem>>, vector<1x128xf32>
    %8 = vector.broadcast %7 : vector<1x128xf32> to vector<8x128xf32>
    %9 = arith.addf %6, %8 : vector<8x128xf32>
    %10 = arith.mulf %9, %9 : vector<8x128xf32>
    %11 = arith.mulf %9, %10 : vector<8x128xf32>
    %cst_6 = arith.constant 4.471500e-02 : f32
    %12 = vector.broadcast %cst_6 : f32 to vector<8x128xf32>
    %13 = arith.mulf %12, %11 : vector<8x128xf32>
    %14 = arith.addf %9, %13 : vector<8x128xf32>
    %cst_7 = arith.constant 0.797884583 : f32
    %15 = vector.broadcast %cst_7 : f32 to vector<8x128xf32>
    %16 = arith.mulf %15, %14 : vector<8x128xf32>
    %17 = math.tanh %16 : vector<8x128xf32>
    %cst_8 = arith.constant 1.000000e+00 : f32
    %18 = vector.broadcast %cst_8 : f32 to vector<8x128xf32>
    %19 = arith.addf %18, %17 : vector<8x128xf32>
    %cst_9 = arith.constant 5.000000e-01 : f32
    %20 = vector.broadcast %cst_9 : f32 to vector<8x128xf32>
    %21 = arith.mulf %20, %19 : vector<8x128xf32>
    %22 = arith.mulf %9, %21 : vector<8x128xf32>
    %c0_10 = arith.constant 0 : index
    %c0_11 = arith.constant 0 : index
    %23 = vector.load %arg7[%c0_10, %c0_11] : memref<8x128xf32, #tpu.memory_space<vmem>>, vector<8x128xf32>
    %24 = arith.truncf %22 : vector<8x128xf32> to vector<8x128xbf16>
    %c0_12 = arith.constant 0 : index
    %c0_13 = arith.constant 0 : index
    %25 = vector.load %arg5[%c0_12, %c0_13] : memref<128x128xbf16, #tpu.memory_space<vmem>>, vector<128x128xbf16>
    %cst_14 = arith.constant dense<0.000000e+00> : vector<8x128xf32>
    %26 = tpu.matmul %24, %25, %cst_14 {dimension_numbers = #tpu.dot_dimension_numbers<[1], [0], [0], [1], [0, 0, 1, 1], [], []>} : vector<8x128xbf16>, vector<128x128xbf16>, vector<8x128xf32> -> vector<8x128xf32>
    %27 = arith.addf %23, %26 : vector<8x128xf32>
    %c0_15 = arith.constant 0 : index
    %c0_16 = arith.constant 0 : index
    %28 = vector.load %arg7[%c0_15, %c0_16] : memref<8x128xf32, #tpu.memory_space<vmem>>, vector<8x128xf32>
    tpu.vector_store %arg7[%c0_15, %c0_16], %27 {strides = array<i32>} : memref<8x128xf32, #tpu.memory_space<vmem>>, vector<8x128xf32>,
    return
  }
  func.func @transform_0(%arg0: i32, %arg1: i32) -> (i32, i32) {
    %c0_i32 = arith.constant 0 : i32
    %c0_i32_0 = arith.constant 0 : i32
    return %arg0, %c0_i32 : i32, i32
  }
  func.func @transform_1(%arg0: i32, %arg1: i32) -> (i32, i32) {
    %c0_i32 = arith.constant 0 : i32
    %c0_i32_0 = arith.constant 0 : i32
    return %c0_i32, %arg1 : i32, i32
  }
  func.func @transform_2(%arg0: i32, %arg1: i32) -> (i32, i32) {
    %c0_i32 = arith.constant 0 : i32
    %c0_i32_0 = arith.constant 0 : i32
    return %c0_i32, %arg1 : i32, i32
  }
  func.func @transform_3(%arg0: i32, %arg1: i32) -> (i32, i32) {
    %c0_i32 = arith.constant 0 : i32
    %c0_i32_0 = arith.constant 0 : i32
    return %arg1, %c0_i32 : i32, i32
  }
  func.func @transform_4(%arg0: i32, %arg1: i32) -> (i32, i32) {
    %c0_i32 = arith.constant 0 : i32
    %c0_i32_0 = arith.constant 0 : i32
    %c0_i32_1 = arith.constant 0 : i32
    return %c0_i32, %c0_i32_0 : i32, i32
  }
  func.func @transform_5(%arg0: i32, %arg1: i32) -> (i32, i32) {
    %c0_i32 = arith.constant 0 : i32
    %c0_i32_0 = arith.constant 0 : i32
    return %arg0, %c0_i32 : i32, i32
  }
}

</mosaic_0001>

<llo_original>
// kernel: feed_forward.1
$region0: #{feed_forward.1}
  #allocation0 [shape = 'u32[]', space=smem, size = 0x4, offset = 0x4, fixed_abs, tag = 'smem constant byte address 0x4 - core index']
  #allocation1 [shape = 'u32[144,128]{1,0:T(1,128)}', space=vmem, size = 0x12000, scoped, tag = 'internal scratch']
  %s0 = inlined_call_operand.vmem [shape: f32[16,128], index: 0, kind: input, shape index: {}]
  %s1 = inlined_call_operand.hbm [shape: bf16[128,128], index: 1, kind: input, shape index: {}]
  %s2 = inlined_call_operand.vmem [shape: f32[1,128], index: 2, kind: input, shape index: {}]
  %s3 = inlined_call_operand.hbm [shape: bf16[128,128], index: 3, kind: input, shape index: {}]
  %s4 = inlined_call_operand.vmem [shape: f32[1,128], index: 4, kind: input, shape index: {}]
  %s5 = inlined_call_operand.vmem [shape: f32[16,128], index: 5, kind: output, shape index: {}]
  %s6 = sld [smem:[#allocation0]]
  $region65: #{feed_forward.1} parent=0
    _
  %s8 = ssub.s32 1, %s6
  %s9 = scalar_select 0, %s8, %s6
  $region1: #{feed_forward.1} parent=0
    #allocation2 [shape = 'u8[32768]{0}', space=vmem, size = 0x8000, scoped, tag = 'input window, operand 1, single buffered']
    #allocation3 [shape = 's32[2]{0}', space=sflag, size = 0x8, scoped, tag = 'scoped memory for feed_forward.1']
    #allocation4 [shape = 'u8[32768]{0}', space=vmem, size = 0x8000, scoped, tag = 'input window, operand 3, single buffered']
    #allocation5 [shape = 's32[1]{0}', space=sflag, size = 0x4, scoped, tag = 'scoped memory for feed_forward.1']
    %10 = vsyncpa [#allocation3], 0
    %11 = vsyncpa [#allocation5], 0
    loop: start=0, step=1, limit=4
    $region2: #{feed_forward.1} parent=1 // loop_pre_header
      _
    $region3: #{feed_forward.1} parent=1 // loop_header
      %s13 = sphi 0, %s17
      %p14 = scmp.ge.s32.totalorder %s13, 4
      %s20 = sphi 0, %s32
      %s21 = sphi 0, %s28
      %s22 = sphi 0, %s20
      %s23 = sphi 0, %s21
      %s24 = sphi 0, %s22
      %s25 = sphi 0, %s23
      %s35 = sphi 0, %s37
      %s38 = sphi 0, %s35
      %s39 = sphi 0, %s38
      %s55 = sphi 0, %s39
      %s61 = sphi 0, %s63
      %s64 = sphi 0, %s61
      %s65 = sphi 0, %s64
      %s81 = sphi 0, %s65
      %s87 = sphi 0, %s89
      %s90 = sphi 0, %s87
      %s91 = sphi 0, %s90
      %s107 = sphi 0, %s91
      %s113 = sphi 0, %s115
      %s116 = sphi 0, %s113
      %s117 = sphi 0, %s116
      %s133 = sphi 0, %s117
      %s137 = sphi 0, %s137
      %s139 = sphi 0, %s137
      %s140 = sphi 0, %s139
      %s154 = sphi 0, %s140
      %s160 = sphi 0, %s162
      %s163 = sphi 0, %s160
      %s164 = sphi 0, %s163
      %s180 = sphi 0, %s164
    $region4: #{feed_forward.1} parent=1 // loop_header_branch
      %16 = sbr.rel (%p14) target = $region8
    $region5: #{feed_forward.1} parent=1 // loop_body
      %s18 = ssub.s32 %s13, 1
      %s19 = ssub.s32 %s13, 2
      %s26 = sadd.s32 1, %s21
      %p27 = scmp.ge.s32.totalorder %s26, 1
      %s28 = scalar_select %p27, 0, %s26
      %s29 = sadd.s32 1, %s20
      %s30 = scalar_select %p27, %s29, %s20
      %p31 = scmp.ge.s32.totalorder %s30, 2
      %s32 = scalar_select %p31, 0, %s30
      %s33 = ssub.s32 %s20, %s32
      %p34 = scmp.eq.s32.totalorder %s33, 0
      %s36 = sadd.s32 %s35, 1
      %s37 = scalar_select %p34, %s35, %s36
      %p40 = pneg %p34
      %p41 = scmp.eq.s32.totalorder %s13, 1
      %p42 = por %p40, %p41
      %p43 = scmp.ne.s32.totalorder %s35, %s38
      %p44 = scmp.eq.s32.totalorder %s13, 0
      %p45 = por %p43, %p44
      %p46 = scmp.ne.s32.totalorder %s35, %s38
      %p47 = scmp.eq.s32.totalorder %s18, 1
      %p48 = por %p46, %p47
      %p49 = scmp.ne.s32.totalorder %s38, %s39
      %p50 = scmp.eq.s32.totalorder %s18, 0
      %p51 = por %p49, %p50
      %p52 = scmp.ne.s32.totalorder %s38, %s39
      %p53 = scmp.eq.s32.totalorder %s19, 1
      %p54 = por %p52, %p53
      %p56 = scmp.ne.s32.totalorder %s39, %s55
      %p57 = scmp.eq.s32.totalorder %s19, 0
      %p58 = por %p56, %p57
      %s59 = ssub.s32 %s21, %s28
      %p60 = scmp.eq.s32.totalorder %s59, 0
      %s62 = sadd.s32 %s61, 1
      %s63 = scalar_select %p60, %s61, %s62
      %p66 = pneg %p60
      %p67 = scmp.eq.s32.totalorder %s13, 1
      %p68 = por %p66, %p67
      %p69 = scmp.ne.s32.totalorder %s61, %s64
      %p70 = scmp.eq.s32.totalorder %s13, 0
      %p71 = por %p69, %p70
      %p72 = scmp.ne.s32.totalorder %s61, %s64
      %p73 = scmp.eq.s32.totalorder %s18, 1
      %p74 = por %p72, %p73
      %p75 = scmp.ne.s32.totalorder %s64, %s65
      %p76 = scmp.eq.s32.totalorder %s18, 0
      %p77 = por %p75, %p76
      %p78 = scmp.ne.s32.totalorder %s64, %s65
      %p79 = scmp.eq.s32.totalorder %s19, 1
      %p80 = por %p78, %p79
      %p82 = scmp.ne.s32.totalorder %s65, %s81
      %p83 = scmp.eq.s32.totalorder %s19, 0
      %p84 = por %p82, %p83
      %s85 = ssub.s32 %s21, %s28
      %p86 = scmp.eq.s32.totalorder %s85, 0
      %s88 = sadd.s32 %s87, 1
      %s89 = scalar_select %p86, %s87, %s88
      %p92 = pneg %p86
      %p93 = scmp.eq.s32.totalorder %s13, 1
      %p94 = por %p92, %p93
      %p95 = scmp.ne.s32.totalorder %s87, %s90
      %p96 = scmp.eq.s32.totalorder %s13, 0
      %p97 = por %p95, %p96
      %p98 = scmp.ne.s32.totalorder %s87, %s90
      %p99 = scmp.eq.s32.totalorder %s18, 1
      %p100 = por %p98, %p99
      %p101 = scmp.ne.s32.totalorder %s90, %s91
      %p102 = scmp.eq.s32.totalorder %s18, 0
      %p103 = por %p101, %p102
      %p104 = scmp.ne.s32.totalorder %s90, %s91
      %p105 = scmp.eq.s32.totalorder %s19, 1
      %p106 = por %p104, %p105
      %p108 = scmp.ne.s32.totalorder %s91, %s107
      %p109 = scmp.eq.s32.totalorder %s19, 0
      %p110 = por %p108, %p109
      %s111 = ssub.s32 %s21, %s28
      %p112 = scmp.eq.s32.totalorder %s111, 0
      %s114 = sadd.s32 %s113, 1
      %s115 = scalar_select %p112, %s113, %s114
      %p118 = pneg %p112
      %p119 = scmp.eq.s32.totalorder %s13, 1
      %p120 = por %p118, %p119
      %p121 = scmp.ne.s32.totalorder %s113, %s116
      %p122 = scmp.eq.s32.totalorder %s13, 0
      %p123 = por %p121, %p122
      %p124 = scmp.ne.s32.totalorder %s113, %s116
      %p125 = scmp.eq.s32.totalorder %s18, 1
      %p126 = por %p124, %p125
      %p127 = scmp.ne.s32.totalorder %s116, %s117
      %p128 = scmp.eq.s32.totalorder %s18, 0
      %p129 = por %p127, %p128
      %p130 = scmp.ne.s32.totalorder %s116, %s117
      %p131 = scmp.eq.s32.totalorder %s19, 1
      %p132 = por %p130, %p131
      %p134 = scmp.ne.s32.totalorder %s117, %s133
      %p135 = scmp.eq.s32.totalorder %s19, 0
      %p136 = por %p134, %p135
      %s138 = sadd.s32 %s137, 1
      %p141 = scmp.eq.s32.totalorder %s13, 1
      %p142 = scmp.ne.s32.totalorder %s137, %s139
      %p143 = scmp.eq.s32.totalorder %s13, 0
      %p144 = por %p142, %p143
      %p145 = scmp.ne.s32.totalorder %s137, %s139
      %p146 = scmp.eq.s32.totalorder %s18, 1
      %p147 = por %p145, %p146
      %p148 = scmp.ne.s32.totalorder %s139, %s140
      %p149 = scmp.eq.s32.totalorder %s18, 0
      %p150 = por %p148, %p149
      %p151 = scmp.ne.s32.totalorder %s139, %s140
      %p152 = scmp.eq.s32.totalorder %s19, 1
      %p153 = por %p151, %p152
      %p155 = scmp.ne.s32.totalorder %s140, %s154
      %p156 = scmp.eq.s32.totalorder %s19, 0
      %p157 = por %p155, %p156
      %s158 = ssub.s32 %s20, %s32
      %p159 = scmp.eq.s32.totalorder %s158, 0
      %s161 = sadd.s32 %s160, 1
      %s162 = scalar_select %p159, %s160, %s161
      %p165 = pneg %p159
      %p166 = scmp.eq.s32.totalorder %s13, 1
      %p167 = por %p165, %p166
      %p168 = scmp.ne.s32.totalorder %s160, %s163
      %p169 = scmp.eq.s32.totalorder %s13, 0
      %p170 = por %p168, %p169
      %p171 = scmp.ne.s32.totalorder %s160, %s163
      %p172 = scmp.eq.s32.totalorder %s18, 1
      %p173 = por %p171, %p172
      %p174 = scmp.ne.s32.totalorder %s163, %s164
      %p175 = scmp.eq.s32.totalorder %s18, 0
      %p176 = por %p174, %p175
      %p177 = scmp.ne.s32.totalorder %s163, %s164
      %p178 = scmp.eq.s32.totalorder %s19, 1
      %p179 = por %p177, %p178
      %p181 = scmp.ne.s32.totalorder %s164, %s180
      %p182 = scmp.eq.s32.totalorder %s19, 0
      %p183 = por %p181, %p182
      %p184 = scmp.le.s32.totalorder 1, %s13
      %p185 = scmp.lt.s32.totalorder %s13, 3
      %p186 = pnand %p184, %p185
      %p187 = pneg %p186
      // Predicated region
      $region9: #{feed_forward.1} parent=5 // pred_check
        _
      $region10: #{feed_forward.1} parent=5 // pred_check_branch
        %189 = sbr.rel (%p186) target = $region12
      $region11: #{feed_forward.1} parent=5 // pred_region
        %s190 = ssub.s32 %s13, 1
        // Predicated region
        $region13: #{feed_forward.1} parent=11 // pred_check
          %p191 = pneg %p77
        $region14: #{feed_forward.1} parent=11 // pred_check_branch
          %193 = sbr.rel (%p191) target = $region16
        $region15: #{feed_forward.1} parent=11 // pred_region
          %s195 = ssub.s32 1024, 1024
          %196 = vsyncadd [#allocation3], %s195
          %s197 = smul.addr %s23, 64
          %s198 = scalar_lea.hbm %s1, %s197
          %s199 = sshll.u32 [#allocation2], 4
          %s200 = int_to_ptr.vmem [resolvable:$true] %s199
          %205 = dma.hbm_to_vmem [thread:$0]  %s198, 1024, %s200, [#allocation3], 64, 64, 4
        $region16: #{feed_forward.1} parent=11 // pred_fallthru
          _
        // Predicated region
        $region17: #{feed_forward.1} parent=11 // pred_check
          %p206 = pneg %p103
        $region18: #{feed_forward.1} parent=11 // pred_check_branch
          %208 = sbr.rel (%p206) target = $region20
        $region19: #{feed_forward.1} parent=11 // pred_region
          %p209 = scmp.lt.s32.totalorder %s23, 0
          %s210 = scalar_select %p209, %s23, 0
          %s211 = scalar_lea.vmem %s2, %s210
        $region20: #{feed_forward.1} parent=11 // pred_fallthru
          _
        // Predicated region
        $region21: #{feed_forward.1} parent=11 // pred_check
          %p212 = pneg %p129
        $region22: #{feed_forward.1} parent=11 // pred_check_branch
          %214 = sbr.rel (%p212) target = $region24
        $region23: #{feed_forward.1} parent=11 // pred_region
          %s215 = smul.u32 16, %s23
          %s217 = ssub.s32 1024, 1024
          %218 = vsyncadd [#allocation5], %s217
          %s219 = smul.addr %s215, 64
          %s220 = scalar_lea.hbm %s3, %s219
          %s221 = sshll.u32 [#allocation4], 4
          %s222 = int_to_ptr.vmem [resolvable:$true] %s221
          %227 = dma.hbm_to_vmem [thread:$0]  %s220, 1024, %s222, [#allocation5], 64, 64, 4
        $region24: #{feed_forward.1} parent=11 // pred_fallthru
          _
        // Predicated region
        $region25: #{feed_forward.1} parent=11 // pred_check
          %p228 = pneg %p150
        $region26: #{feed_forward.1} parent=11 // pred_check_branch
          %230 = sbr.rel (%p228) target = $region28
        $region27: #{feed_forward.1} parent=11 // pred_region
          _
        $region28: #{feed_forward.1} parent=11 // pred_fallthru
          _
      $region12: #{feed_forward.1} parent=5 // pred_fallthru
        _
      %p231 = scmp.lt.s32.totalorder %s13, 2
      // Predicated region
      $region29: #{feed_forward.1} parent=5 // pred_check
        %p232 = pneg %p231
      $region30: #{feed_forward.1} parent=5 // pred_check_branch
        %234 = sbr.rel (%p232) target = $region32
      $region31: #{feed_forward.1} parent=5 // pred_region
        // Predicated region
        $region33: #{feed_forward.1} parent=31 // pred_check
          %p235 = pneg %p45
        $region34: #{feed_forward.1} parent=31 // pred_check_branch
          %237 = sbr.rel (%p235) target = $region36
        $region35: #{feed_forward.1} parent=31 // pred_region
          %p238 = scmp.lt.s32.totalorder %s20, 1
          %s239 = scalar_select %p238, %s20, 1
          %s240 = smul.addr %s239, 8
          %s241 = scalar_lea.vmem %s0, %s240
        $region36: #{feed_forward.1} parent=31 // pred_fallthru
          _
      $region32: #{feed_forward.1} parent=5 // pred_fallthru
        _
      %p242 = scmp.le.s32.totalorder 1, %s13
      %p243 = scmp.lt.s32.totalorder %s13, 3
      %p244 = pnand %p242, %p243
      %p245 = pneg %p244
      // Predicated region
      $region37: #{feed_forward.1} parent=5 // pred_check
        _
      $region38: #{feed_forward.1} parent=5 // pred_check_branch
        %247 = sbr.rel (%p244) target = $region40
      $region39: #{feed_forward.1} parent=5 // pred_region
        %s248 = ssub.s32 %s13, 1
        // Predicated region
        $region41: #{feed_forward.1} parent=39 // pred_check
          %p249 = pneg %p77
        $region42: #{feed_forward.1} parent=39 // pred_check_branch
          %251 = sbr.rel (%p249) target = $region44
        $region43: #{feed_forward.1} parent=39 // pred_region
          %252 = dma.done [#allocation3], 1024
        $region44: #{feed_forward.1} parent=39 // pred_fallthru
          _
        // Predicated region
        $region45: #{feed_forward.1} parent=39 // pred_check
          %p253 = pneg %p129
        $region46: #{feed_forward.1} parent=39 // pred_check_branch
          %255 = sbr.rel (%p253) target = $region48
        $region47: #{feed_forward.1} parent=39 // pred_region
          %256 = dma.done [#allocation5], 1024
        $region48: #{feed_forward.1} parent=39 // pred_fallthru
          _
        %p257 = scmp.lt.s32.totalorder %s22, 1
        %s258 = scalar_select %p257, %s22, 1
        %s259 = smul.addr %s258, 8
        %s260 = scalar_lea.vmem %s0, %s259
        %p261 = pneg %p51
        %p262 = pneg %p48
        %p263 = pneg %p77
        %p264 = pneg %p74
        %p265 = scmp.lt.s32.totalorder %s23, 0
        %s266 = scalar_select %p265, %s23, 0
        %s267 = scalar_lea.vmem %s2, %s266
        %p268 = pneg %p103
        %p269 = pneg %p100
        %p270 = pneg %p129
        %p271 = pneg %p126
        %p272 = pneg %p150
        %p273 = pneg %p147
        %p274 = pneg %p176
        %p275 = pneg %p173
        %p276 = scmp.lt.s32.totalorder %s22, 1
        %s277 = scalar_select %p276, %s22, 1
        %s278 = smul.addr %s277, 8
        %s279 = scalar_lea.vmem %s5, %s278
        %p280 = scmp.lt.s32.totalorder %s22, 1
        %s281 = scalar_select %p280, %s22, 1
        %s282 = smul.addr %s281, 8
        %s283 = scalar_lea.vmem %s0, %s282
        %p284 = scmp.lt.s32.totalorder %s23, 0
        %s285 = scalar_select %p284, %s23, 0
        %s286 = scalar_lea.vmem %s2, %s285
        %s287 = smul.u32 16, %s23
        %p288 = scmp.lt.s32.totalorder %s22, 1
        %s289 = scalar_select %p288, %s22, 1
        %s290 = smul.addr %s289, 8
        %s291 = scalar_lea.vmem %s5, %s290
        %p293 = scmp.eq.s32.totalorder %s23, 0
        // Predicated region
        $region49: #{feed_forward.1} parent=39 // pred_check
          %p294 = pneg %p293
        $region50: #{feed_forward.1} parent=39 // pred_check_branch
          %296 = sbr.rel (%p294) target = $region52
        $region51: #{feed_forward.1} parent=39 // pred_region
          %v297 = vld [vmem:[%s4] sm:$0x1]
          %v299 = vlaneseq
          %v300 = vshrl.u32 %v299, 7
          %v301 = vsub.s32 0, %v300
          %v302 = vrot.slane %v297, %v301
          %304 = vst [vmem:[%s291] sm:$0xff] %v302
        $region52: #{feed_forward.1} parent=39 // pred_fallthru
          _
        %v305 = vld [vmem:[%s283] sm:$0xff]
        %v306 = vpack.c.bf16 %v305, %v305
        %v307 = vld [vmem:[#allocation2] sm:$0xf]
        %v308 = vld [vmem:[#allocation2 + $0x4] sm:$0xf]
        %v309 = vld [vmem:[#allocation2 + $0x8] sm:$0xf]
        %v310 = vld [vmem:[#allocation2 + $0xc] sm:$0xf]
        %v311 = vld [vmem:[#allocation2 + $0x10] sm:$0xf]
        %v312 = vld [vmem:[#allocation2 + $0x14] sm:$0xf]
        %v313 = vld [vmem:[#allocation2 + $0x18] sm:$0xf]
        %v314 = vld [vmem:[#allocation2 + $0x1c] sm:$0xf]
        %v315 = vld [vmem:[#allocation2 + $0x20] sm:$0xf]
        %v316 = vld [vmem:[#allocation2 + $0x24] sm:$0xf]
        %v317 = vld [vmem:[#allocation2 + $0x28] sm:$0xf]
        %v318 = vld [vmem:[#allocation2 + $0x2c] sm:$0xf]
        %v319 = vld [vmem:[#allocation2 + $0x30] sm:$0xf]
        %v320 = vld [vmem:[#allocation2 + $0x34] sm:$0xf]
        %v321 = vld [vmem:[#allocation2 + $0x38] sm:$0xf]
        %v322 = vld [vmem:[#allocation2 + $0x3c] sm:$0xf]
        %v323 = vld [vmem:[%s286] sm:$0x1]
        %v325 = vlaneseq
        %v326 = vshrl.u32 %v325, 7
        %v327 = vsub.s32 0, %v326
        %v328 = vrot.slane %v323, %v327
        %v346 = vunpack.c.l.b16 %v307
        %v347 = vunpack.c.l.b16 %v308
        %v348 = vunpack.c.l.b16 %v309
        %v349 = vunpack.c.l.b16 %v310
        %v350 = vunpack.c.l.b16 %v311
        %v351 = vunpack.c.l.b16 %v312
        %v352 = vunpack.c.l.b16 %v313
        %v353 = vunpack.c.l.b16 %v314
        %v354 = vunpack.c.l.b16 %v315
        %v355 = vunpack.c.l.b16 %v316
        %v356 = vunpack.c.l.b16 %v317
        %v357 = vunpack.c.l.b16 %v318
        %v358 = vunpack.c.l.b16 %v319
        %v359 = vunpack.c.l.b16 %v320
        %v360 = vunpack.c.l.b16 %v321
        %v361 = vunpack.c.l.b16 %v322
        %v362 = vpack.c.b16 %v347, %v346
        %v363 = vpack.c.b16 %v349, %v348
        %v364 = vpack.c.b16 %v351, %v350
        %v365 = vpack.c.b16 %v353, %v352
        %v366 = vpack.c.b16 %v355, %v354
        %v367 = vpack.c.b16 %v357, %v356
        %v368 = vpack.c.b16 %v359, %v358
        %v369 = vpack.c.b16 %v361, %v360
        %378 = vmatprep.subr.bf16.mxu0 0
        %379 = vmatpush1.bf16.msra.mxu0 %v362
        %380 = vmatprep.subr.bf16.mxu0 0
        %381 = vmatpush1.bf16.msra.mxu0 %v363
        %382 = vmatprep.subr.bf16.mxu0 0
        %383 = vmatpush1.bf16.msra.mxu0 %v364
        %384 = vmatprep.subr.bf16.mxu0 0
        %385 = vmatpush1.bf16.msra.mxu0 %v365
        %386 = vmatprep.subr.bf16.mxu0 0
        %387 = vmatpush1.bf16.msra.mxu0 %v366
        %388 = vmatprep.subr.bf16.mxu0 0
        %389 = vmatpush1.bf16.msra.mxu0 %v367
        %390 = vmatprep.subr.bf16.mxu0 0
        %391 = vmatpush1.bf16.msra.mxu0 %v368
        %392 = vmatprep.subr.bf16.mxu0 0
        %393 = vmatpush1.bf16.msra.mxu0 %v369
        %394 = vmatprep.subr.bf16.mxu0 0
        %395 = vmatpush1.bf16.msra.mxu0 0
        %396 = vmatprep.subr.bf16.mxu0 0
        %397 = vmatpush1.bf16.msra.mxu0 0
        %398 = vmatprep.subr.bf16.mxu0 0
        %399 = vmatpush1.bf16.msra.mxu0 0
        %400 = vmatprep.subr.bf16.mxu0 0
        %401 = vmatpush1.bf16.msra.mxu0 0
        %402 = vmatprep.subr.bf16.mxu0 0
        %403 = vmatpush1.bf16.msra.mxu0 0
        %404 = vmatprep.subr.bf16.mxu0 0
        %405 = vmatpush1.bf16.msra.mxu0 0
        %406 = vmatprep.subr.bf16.mxu0 0
        %407 = vmatpush1.bf16.msra.mxu0 0
        %408 = vmatprep.subr.bf16.mxu0 0
        %409 = vmatpush1.bf16.msra.mxu0 0
        %410 = vmatprep.mubr.bf16.mxu0 0
        %411 = vmatmul.mubr.bf16.gmra.mrb[0].mxu0 %v306
        %v412 = vpop.f32.mrb[0].mxu0
        %v413 = vadd.f32 %v328, %v412
        %v414 = vpop.f32.mrb[0].mxu0
        %v415 = vpop.f32.mrb[0].mxu0
        %v416 = vpop.f32.mrb[0].mxu0
        %417 = vdwg.mxu0
        %v418 = vmul.f32 %v413, %v413
        %v419 = vmul.f32 %v413, %v418
        %v420 = vmul.f32 %v419, 0.044715
        %v421 = vadd.f32 %v413, %v420
        %v422 = vmul.f32 %v421, 0.7978846
        %v423 = vtanh.pop %v422
        %v424 = vadd.f32 %v423, 1.0
        %v425 = vmul.f32 %v424, 0.5
        %v426 = vmul.f32 %v413, %v425
        %v427 = vld [vmem:[%s291] sm:$0xff]
        %v428 = vpack.c.bf16 %v426, %v426
        %v429 = vld [vmem:[#allocation4] sm:$0xf]
        %v430 = vld [vmem:[#allocation4 + $0x4] sm:$0xf]
        %v431 = vld [vmem:[#allocation4 + $0x8] sm:$0xf]
        %v432 = vld [vmem:[#allocation4 + $0xc] sm:$0xf]
        %v433 = vld [vmem:[#allocation4 + $0x10] sm:$0xf]
        %v434 = vld [vmem:[#allocation4 + $0x14] sm:$0xf]
        %v435 = vld [vmem:[#allocation4 + $0x18] sm:$0xf]
        %v436 = vld [vmem:[#allocation4 + $0x1c] sm:$0xf]
        %v437 = vld [vmem:[#allocation4 + $0x20] sm:$0xf]
        %v438 = vld [vmem:[#allocation4 + $0x24] sm:$0xf]
        %v439 = vld [vmem:[#allocation4 + $0x28] sm:$0xf]
        %v440 = vld [vmem:[#allocation4 + $0x2c] sm:$0xf]
        %v441 = vld [vmem:[#allocation4 + $0x30] sm:$0xf]
        %v442 = vld [vmem:[#allocation4 + $0x34] sm:$0xf]
        %v443 = vld [vmem:[#allocation4 + $0x38] sm:$0xf]
        %v444 = vld [vmem:[#allocation4 + $0x3c] sm:$0xf]
        %v461 = vunpack.c.l.b16 %v429
        %v462 = vunpack.c.l.b16 %v430
        %v463 = vunpack.c.l.b16 %v431
        %v464 = vunpack.c.l.b16 %v432
        %v465 = vunpack.c.l.b16 %v433
        %v466 = vunpack.c.l.b16 %v434
        %v467 = vunpack.c.l.b16 %v435
        %v468 = vunpack.c.l.b16 %v436
        %v469 = vunpack.c.l.b16 %v437
        %v470 = vunpack.c.l.b16 %v438
        %v471 = vunpack.c.l.b16 %v439
        %v472 = vunpack.c.l.b16 %v440
        %v473 = vunpack.c.l.b16 %v441
        %v474 = vunpack.c.l.b16 %v442
        %v475 = vunpack.c.l.b16 %v443
        %v476 = vunpack.c.l.b16 %v444
        %v477 = vpack.c.b16 %v462, %v461
        %v478 = vpack.c.b16 %v464, %v463
        %v479 = vpack.c.b16 %v466, %v465
        %v480 = vpack.c.b16 %v468, %v467
        %v481 = vpack.c.b16 %v470, %v469
        %v482 = vpack.c.b16 %v472, %v471
        %v483 = vpack.c.b16 %v474, %v473
        %v484 = vpack.c.b16 %v476, %v475
        %493 = vmatprep.subr.bf16.mxu0 0
        %494 = vmatpush1.bf16.msra.mxu0 %v477
        %495 = vmatprep.subr.bf16.mxu0 0
        %496 = vmatpush1.bf16.msra.mxu0 %v478
        %497 = vmatprep.subr.bf16.mxu0 0
        %498 = vmatpush1.bf16.msra.mxu0 %v479
        %499 = vmatprep.subr.bf16.mxu0 0
        %500 = vmatpush1.bf16.msra.mxu0 %v480
        %501 = vmatprep.subr.bf16.mxu0 0
        %502 = vmatpush1.bf16.msra.mxu0 %v481
        %503 = vmatprep.subr.bf16.mxu0 0
        %504 = vmatpush1.bf16.msra.mxu0 %v482
        %505 = vmatprep.subr.bf16.mxu0 0
        %506 = vmatpush1.bf16.msra.mxu0 %v483
        %507 = vmatprep.subr.bf16.mxu0 0
        %508 = vmatpush1.bf16.msra.mxu0 %v484
        %509 = vmatprep.subr.bf16.mxu0 0
        %510 = vmatpush1.bf16.msra.mxu0 0
        %511 = vmatprep.subr.bf16.mxu0 0
        %512 = vmatpush1.bf16.msra.mxu0 0
        %513 = vmatprep.subr.bf16.mxu0 0
        %514 = vmatpush1.bf16.msra.mxu0 0
        %515 = vmatprep.subr.bf16.mxu0 0
        %516 = vmatpush1.bf16.msra.mxu0 0
        %517 = vmatprep.subr.bf16.mxu0 0
        %518 = vmatpush1.bf16.msra.mxu0 0
        %519 = vmatprep.subr.bf16.mxu0 0
        %520 = vmatpush1.bf16.msra.mxu0 0
        %521 = vmatprep.subr.bf16.mxu0 0
        %522 = vmatpush1.bf16.msra.mxu0 0
        %523 = vmatprep.subr.bf16.mxu0 0
        %524 = vmatpush1.bf16.msra.mxu0 0
        %525 = vmatprep.mubr.bf16.mxu0 0
        %526 = vmatmul.mubr.bf16.gmra.mrb[0].mxu0 %v428
        %v527 = vpop.f32.mrb[0].mxu0
        %v528 = vadd.f32 0.0, %v527
        %v529 = vpop.f32.mrb[0].mxu0
        %v530 = vpop.f32.mrb[0].mxu0
        %v531 = vpop.f32.mrb[0].mxu0
        %532 = vdwg.mxu0
        %v533 = vadd.f32 %v427, %v528
        %534 = vst [vmem:[%s291] sm:$0xff] %v533
        %p535 = scmp.lt.s32.totalorder %s22, 1
        %s536 = scalar_select %p535, %s22, 1
        %s537 = smul.addr %s536, 8
        %s538 = scalar_lea.vmem %s5, %s537
        // Predicated region
        $region53: #{feed_forward.1} parent=39 // pred_check
          %p539 = pneg %p173
        $region54: #{feed_forward.1} parent=39 // pred_check_branch
          %541 = sbr.rel (%p539) target = $region56
        $region55: #{feed_forward.1} parent=39 // pred_region
          _
        $region56: #{feed_forward.1} parent=39 // pred_fallthru
          _
      $region40: #{feed_forward.1} parent=5 // pred_fallthru
        _
      %p542 = scmp.le.s32.totalorder 2, %s13
      // Predicated region
      $region57: #{feed_forward.1} parent=5 // pred_check
        %p543 = pneg %p542
      $region58: #{feed_forward.1} parent=5 // pred_check_branch
        %545 = sbr.rel (%p543) target = $region60
      $region59: #{feed_forward.1} parent=5 // pred_region
        %s546 = ssub.s32 %s13, 2
        // Predicated region
        $region61: #{feed_forward.1} parent=59 // pred_check
          %p547 = pneg %p179
        $region62: #{feed_forward.1} parent=59 // pred_check_branch
          %549 = sbr.rel (%p547) target = $region64
        $region63: #{feed_forward.1} parent=59 // pred_region
          %p550 = scmp.lt.s32.totalorder %s24, 1
          %s551 = scalar_select %p550, %s24, 1
          %s552 = smul.addr %s551, 8
          %s553 = scalar_lea.vmem %s5, %s552
        $region64: #{feed_forward.1} parent=59 // pred_fallthru
          _
      $region60: #{feed_forward.1} parent=5 // pred_fallthru
        _
    $region6: #{feed_forward.1} parent=1 // loop_footer
      %s17 = sadd.s32 1, %s13
    $region7: #{feed_forward.1} parent=1 // loop_footer_branch
      %12 = sbr.rel target = $region3
    $region8: #{feed_forward.1} parent=1 // loop_exit
      _
    %554 = vsyncpa [#allocation3], 1
    %s555 = scalar_lea.sflag [#allocation3], 1
    %556 = vsyncpa %s555, 1
    %557 = vsyncpa [#allocation5], 1

</llo_original>
